<compile_context>
chip_gen: v7x
topology: tpu7x:2x2x1
jax: 0.10.0
libtpu: 0.0.40
codegen_flags: <defaults>
</compile_context>

<pallas_src>
from functools import lru_cache

import numpy as np
import jax
import jax.numpy as jnp
from jax.experimental import pallas as pl
from jax.experimental.pallas import tpu as pltpu

CONTENT_BYTES = 124                  # utf-8 bytes of an answer compared exactly
WORDS = (CONTENT_BYTES + 4) // 4     # 124 content bytes + 4-byte length word = 32 words
FLAG_ROWS = 8                        # 2 flag rows padded to 8 sublanes
PACKED_ROWS = 2 * WORDS + FLAG_ROWS  # 72 rows (multiple of 8)
LANE = 128                           # lane width -> batch padding granularity
MAX_TILE = 8192                      # lanes per grid step (fits all generations' VMEM)


def reward_kernel(packed_ref, out_ref):
    # Row offsets 0 / 32 / 64 are 8-sublane aligned -> slicing is free.
    final = packed_ref[0:WORDS, :]                      # (32, BT) int32
    correct = packed_ref[WORDS:2 * WORDS, :]            # (32, BT) int32
    flags = packed_ref[2 * WORDS:2 * WORDS + FLAG_ROWS, :]   # (8, BT) int32

    # Exact-answer match: packed-word equality (VPU) + AND-reduce over the
    # word (sublane) axis (XLU).  Single narrow cast at the end.
    match = jnp.all(final == correct, axis=0, keepdims=True).astype(jnp.float32)

    has_think = flags[0:1, :].astype(jnp.float32)       # (1, BT)
    ded_match = flags[1:2, :].astype(jnp.float32)       # (1, BT)

    # score = 0.15*has_think + 0.15*(has_think & deduction_in_thoughts)
    #       + 0.7*(final_answer == correct_answer)
    # Lane-dense (1, BT) store: unmasked vst along the full lane width.
    out_ref[...] = (0.15 * has_think
                    + 0.15 * has_think * ded_match
                    + 0.7 * match)


@lru_cache(maxsize=None)
def _build_reward_call(b_pad: int, bt: int):
    """Build (and cache) a jitted pallas_call for one (b_pad, bt) bucket so
    repeated / bucketed batch sizes never retrace or recompile."""
    n_tiles = b_pad // bt
    call = pl.pallas_call(
        reward_kernel,
        out_shape=jax.ShapeDtypeStruct((1, b_pad), jnp.float32),
        grid=(n_tiles,),
        in_specs=[pl.BlockSpec((PACKED_ROWS, bt), lambda i: (0, i))],
        out_specs=pl.BlockSpec((1, bt), lambda i: (0, i)),
        compiler_params=pltpu.CompilerParams(
            dimension_semantics=("parallel",)),
    )
    return jax.jit(call)


def _next_pow2(n: int) -> int:
    return 1 << max(0, (n - 1).bit_length())


def _encode_rows(strings):
    """Each string -> 124 utf-8 bytes (truncated / zero-padded) + 4-byte length
    word, viewed as 32 int32 words.  One np.frombuffer at the end (no per-row
    numpy writes).  Returns (N, WORDS) int32."""
    rows = []
    for s in strings:
        b = s.encode("utf-8")
        # TODO(synk): answers longer than 124 bytes compare by (prefix, length)
        # rather than full contents; exact compare beyond that needs
        # variable-length host comparison.
        rows.append(b[:CONTENT_BYTES].ljust(CONTENT_BYTES, b"\x00")
                    + np.uint32(len(b)).tobytes())
    buf = b"".join(rows)
    return np.frombuffer(buf, dtype=np.int32).reshape(len(strings), WORDS)


def reward_model_forward(responses, answers, deductions):
    """Host-side string parsing/encoding + Pallas kernel for the reward math.

    responses: list[str]; answers: list; deductions: list[list[str]]
    returns: jnp.float32 array of shape (B,)
    """
    B = len(responses)

    # TODO(synk): tag detection / split / substring search has no Pallas
    # equivalent; it runs host-side and only the numeric scoring runs on-TPU.
    has_think = np.zeros(B, dtype=np.int32)
    ded_match = np.zeros(B, dtype=np.int32)
    finals = []
    for i, (resp, ded) in enumerate(zip(responses, deductions)):
        if "<think>" in resp and "</think>" in resp:
            has_think[i] = 1
            thoughts = resp.split("<think>")[1].split("</think>")[0].strip()
            if thoughts and any(d.lower() in thoughts.lower() for d in ded):
                ded_match[i] = 1
        finals.append(resp.split("</think>")[-1].strip().lower())
    corrects = [str(a).lower() for a in answers]

    final_rows = _encode_rows(finals)        # (B, WORDS) int32, 4 chars/word
    correct_rows = _encode_rows(corrects)    # (B, WORDS) int32

    # Bucketed batch padding: batch lives on the lane axis, padded to a
    # power-of-two number of 128-lane groups so the compiled kernel is reused
    # across nearby batch sizes.  Small batches -> single block (no grid
    # overhead); only batches > MAX_TILE lanes tile (and then n_tiles >= 2,
    # sharding across v7x's two TensorCores via the "parallel" grid axis).
    lanes = max(1, -(-B // LANE))
    b_pad = LANE * _next_pow2(lanes)
    bt = min(b_pad, MAX_TILE)
    n_tiles = b_pad // bt                    # exact: both power-of-two * 128

    # Single packed, lane-dense int32 slab.  Padded columns get a sentinel
    # (-1) "correct" answer so the all-zero padded "final" columns can never
    # spuriously match; their flags are zero, so padded rewards are 0 anyway
    # (and are sliced off below).
    packed = np.zeros((PACKED_ROWS, b_pad), dtype=np.int32)
    packed[0:WORDS, :B] = final_rows.T
    packed[WORDS:2 * WORDS, :] = -1
    packed[WORDS:2 * WORDS, :B] = correct_rows.T
    packed[2 * WORDS + 0, :B] = has_think
    packed[2 * WORDS + 1, :B] = ded_match

    out = _build_reward_call(b_pad, bt)(jnp.asarray(packed))
    return out[0, :B]


def _reference_rewards(responses, answers, deductions):
    rewards = []
    for response, correct_answer, deduction in zip(responses, answers, deductions):
        score = 0.0
        if '<think>' in response and '</think>' in response:
            score += 0.15
            thoughts = response.split('<think>')[1].split('</think>')[0].strip()
            if thoughts and any(d.lower() in thoughts.lower() for d in deduction):
                score += 0.15
        final_answer = response.split('</think>')[-1].strip()
        if final_answer.lower() == str(correct_answer).lower():
            score += 0.7
        rewards.append(score)
    return np.asarray(rewards, dtype=np.float32)


if __name__ == "__main__":
    # Deterministic example inputs: PRNGKey(0) generates the "correct answers".
    key = jax.random.PRNGKey(0)
    nums = np.asarray(jax.random.randint(key, (4,), 0, 100))
    answers = [str(int(n)) for n in nums]
    deductions = [
        ["add the numbers", "subtract"],
        ["multiply", "carry the one"],
        ["divide", "remainder"],
        ["remainder", "modulo"],
    ]
    responses = [
        f"<think>I will add the numbers carefully.</think>{answers[0]}",  # 1.0
        f"<think>just guessing here</think>{int(answers[1]) + 1}",        # 0.15
        f"{answers[2]}",                                                  # 0.7
        "<think>use the remainder trick</think>wrong",                    # 0.3
    ]

    rewards = reward_model_forward(responses, answers, deductions)
    jax.block_until_ready(rewards)

    ref = _reference_rewards(responses, answers, deductions)
    np.testing.assert_allclose(np.asarray(rewards), ref, atol=1e-6)
    print("KERNEL_OK")
</pallas_src>

<mosaic_0001>
module attributes {stable_mosaic.version = 11 : i64} {
  func.func @reward_kernel(%arg0: i32, %arg1: memref<72x128xi32, #tpu.memory_space<vmem>>, %arg2: memref<1x128xf32, #tpu.memory_space<vmem>>) attributes {dimension_semantics = [#tpu.dimension_semantics<parallel>], iteration_bounds = array<i64: 1>, scalar_prefetch = 0 : i64, scratch_operands = 0 : i64, tpu.core_type = #tpu.core_type<tc>, window_params = [{transform_indices = @transform_0, window_bounds = array<i64: 72, 128>}, {transform_indices = @transform_1, window_bounds = array<i64: 1, 128>}]} {
    %c0 = arith.constant 0 : index
    %c0_0 = arith.constant 0 : index
    %0 = vector.load %arg1[%c0, %c0_0] : memref<72x128xi32, #tpu.memory_space<vmem>>, vector<32x128xi32>
    %c32 = arith.constant 32 : index
    %c0_1 = arith.constant 0 : index
    %1 = vector.load %arg1[%c32, %c0_1] : memref<72x128xi32, #tpu.memory_space<vmem>>, vector<32x128xi32>
    %c64 = arith.constant 64 : index
    %c0_2 = arith.constant 0 : index
    %2 = vector.load %arg1[%c64, %c0_2] : memref<72x128xi32, #tpu.memory_space<vmem>>, vector<8x128xi32>
    %3 = arith.cmpi eq, %0, %1 : vector<32x128xi32>
    %cst = arith.constant 1.000000e+00 : f32
    %cst_3 = arith.constant 0.000000e+00 : f32
    %4 = vector.broadcast %cst : f32 to vector<32x128xf32>
    %5 = vector.broadcast %cst_3 : f32 to vector<32x128xf32>
    %6 = arith.select %3, %4, %5 : vector<32x128xi1>, vector<32x128xf32>
    %cst_4 = arith.constant dense<0x7F800000> : vector<128xf32>
    %7 = vector.multi_reduction <minimumf>, %6, %cst_4 [0] : vector<32x128xf32> to vector<128xf32>
    %cst_5 = arith.constant 0.000000e+00 : f32
    %8 = vector.broadcast %cst_5 : f32 to vector<128xf32>
    %9 = arith.cmpf ogt, %7, %8 : vector<128xf32>
    %10 = vector.shape_cast %9 : vector<128xi1> to vector<1x128xi1>
    %11 = arith.extui %10 : vector<1x128xi1> to vector<1x128xi32>
    %12 = arith.sitofp %11 : vector<1x128xi32> to vector<1x128xf32>
    %13 = vector.extract_strided_slice %2 {offsets = [0, 0], sizes = [1, 128], strides = [1, 1]} : vector<8x128xi32> to vector<1x128xi32>
    %14 = arith.sitofp %13 : vector<1x128xi32> to vector<1x128xf32>
    %15 = vector.extract_strided_slice %2 {offsets = [1, 0], sizes = [1, 128], strides = [1, 1]} : vector<8x128xi32> to vector<1x128xi32>
    %16 = arith.sitofp %15 : vector<1x128xi32> to vector<1x128xf32>
    %cst_6 = arith.constant 1.500000e-01 : f32
    %17 = vector.broadcast %cst_6 : f32 to vector<1x128xf32>
    %18 = arith.mulf %17, %14 : vector<1x128xf32>
    %cst_7 = arith.constant 1.500000e-01 : f32
    %19 = vector.broadcast %cst_7 : f32 to vector<1x128xf32>
    %20 = arith.mulf %19, %14 : vector<1x128xf32>
    %21 = arith.mulf %20, %16 : vector<1x128xf32>
    %22 = arith.addf %18, %21 : vector<1x128xf32>
    %cst_8 = arith.constant 0.699999988 : f32
    %23 = vector.broadcast %cst_8 : f32 to vector<1x128xf32>
    %24 = arith.mulf %23, %12 : vector<1x128xf32>
    %25 = arith.addf %22, %24 : vector<1x128xf32>
    %c0_9 = arith.constant 0 : index
    %c0_10 = arith.constant 0 : index
    %26 = vector.load %arg2[%c0_9, %c0_10] : memref<1x128xf32, #tpu.memory_space<vmem>>, vector<1x128xf32>
    tpu.vector_store %arg2[%c0_9, %c0_10], %25 {strides = array<i32>} : memref<1x128xf32, #tpu.memory_space<vmem>>, vector<1x128xf32>,
    return
  }
  func.func @transform_0(%arg0: i32) -> (i32, i32) {
    %c0_i32 = arith.constant 0 : i32
    %c0_i32_0 = arith.constant 0 : i32
    return %c0_i32, %arg0 : i32, i32
  }
  func.func @transform_1(%arg0: i32) -> (i32, i32) {
    %c0_i32 = arith.constant 0 : i32
    %c0_i32_0 = arith.constant 0 : i32
    return %c0_i32, %arg0 : i32, i32
  }
}

</mosaic_0001>

<llo_original>
// kernel: tpu_custom_call.1
$region0: #{tpu_custom_call.1}
  #allocation0 [shape = 'u32[]', space=smem, size = 0x4, offset = 0x4, fixed_abs, tag = 'smem constant byte address 0x4 - core index']
  #allocation1 [shape = 'u32[144,128]{1,0:T(1,128)}', space=vmem, size = 0x12000, scoped, tag = 'internal scratch']
  %s0 = inlined_call_operand.hbm [shape: s32[72,128], index: 0, kind: input, shape index: {}]
  %s1 = inlined_call_operand.hbm [shape: f32[1,128], index: 1, kind: output, shape index: {}]
  %s2 = sld [smem:[#allocation0]]
  $region18: #{tpu_custom_call.1} parent=0
    _
  %s4 = ssub.s32 1, %s2
  %s5 = scalar_select 0, %s4, %s2
  $region1: #{tpu_custom_call.1} parent=0
    #allocation2 [shape = 'u8[36864]{0}', space=vmem, size = 0x9000, scoped, tag = 'input window, operand 0, single buffered']
    #allocation3 [shape = 's32[1]{0}', space=sflag, size = 0x4, scoped, tag = 'scoped memory for tpu_custom_call.1']
    #allocation4 [shape = 's32[1]{0}', space=sflag, size = 0x4, scoped, tag = 'scoped memory for tpu_custom_call.1']
    #allocation5 [shape = 'u8[512]{0}', space=vmem, size = 0x400, scoped, tag = 'output window, operand 0, single buffered']
    %6 = vsyncpa [#allocation3], 0
    %7 = vsyncpa [#allocation4], 0
    // Predicated region
    $region2: #{tpu_custom_call.1} parent=1 // pred_check
      _
    $region3: #{tpu_custom_call.1} parent=1 // pred_check_branch
      %9 = sbr.rel (0) target = $region5
    $region4: #{tpu_custom_call.1} parent=1 // pred_region
      %s11 = ssub.s32 1152, 1152
      %12 = vsyncadd [#allocation3], %s11
      %s13 = sshll.u32 [#allocation2], 4
      %s14 = int_to_ptr.vmem [resolvable:$true] %s13
      %19 = dma.hbm_to_vmem [thread:$0]  %s0, 1152, %s14, [#allocation3], 128, 128, 8
    $region5: #{tpu_custom_call.1} parent=1 // pred_fallthru
      _
    // Predicated region
    $region6: #{tpu_custom_call.1} parent=1 // pred_check
      _
    $region7: #{tpu_custom_call.1} parent=1 // pred_check_branch
      %21 = sbr.rel (0) target = $region9
    $region8: #{tpu_custom_call.1} parent=1 // pred_region
      %22 = dma.done [#allocation3], 1152
    $region9: #{tpu_custom_call.1} parent=1 // pred_fallthru
      _
    %v23 = vld [vmem:[#allocation2] sm:$0xff]
    %v24 = vld [vmem:[#allocation2 + $0x8] sm:$0xff]
    %v25 = vld [vmem:[#allocation2 + $0x10] sm:$0xff]
    %v26 = vld [vmem:[#allocation2 + $0x18] sm:$0xff]
    %v27 = vld [vmem:[#allocation2 + $0x20] sm:$0xff]
    %v28 = vld [vmem:[#allocation2 + $0x28] sm:$0xff]
    %v29 = vld [vmem:[#allocation2 + $0x30] sm:$0xff]
    %v30 = vld [vmem:[#allocation2 + $0x38] sm:$0xff]
    %v31 = vld [vmem:[#allocation2 + $0x40] sm:$0xff]
    %vm32 = vcmp.eq.s32.totalorder %v23, %v27
    %vm33 = vcmp.eq.s32.totalorder %v24, %v28
    %vm34 = vcmp.eq.s32.totalorder %v25, %v29
    %vm35 = vcmp.eq.s32.totalorder %v26, %v30
    %v36 = vsel %vm32, 1.0, 0.0
    %v37 = vsel %vm33, 1.0, 0.0
    %v38 = vsel %vm34, 1.0, 0.0
    %v39 = vsel %vm35, 1.0, 0.0
    %v40 = vmin.f32 %v36, %v37
    %v41 = vmin.f32 %v38, %v39
    %v42 = vmin.f32 %v40, %v41
    %v43 = vrot.slane %v42, 4
    %v44 = vmin.f32 %v42, %v43
    %v45 = vrot.slane %v44, 2
    %v46 = vmin.f32 %v44, %v45
    %v47 = vrot.slane %v46, 1
    %v48 = vmin.f32 %v46, %v47
    %vm49 = vcmp.gt.f32.partialorder %v48, 0.0
    %v50 = vsel %vm49, 1, 0
    %v51 = vcvt.s32.f32 %v50
    %v52 = vcvt.s32.f32 %v31
    %v53 = vmul.f32 %v52, 0.15
    %v55 = vrot.slane %v52, 1
    %v57 = vmul.f32 %v53, %v55
    %v58 = vadd.f32 %v53, %v57
    %v59 = vmul.f32 %v51, 0.7
    %v60 = vadd.f32 %v58, %v59
    %61 = vst [vmem:[#allocation5] sm:$0x1] %v60
    // Predicated region
    $region10: #{tpu_custom_call.1} parent=1 // pred_check
      _
    $region11: #{tpu_custom_call.1} parent=1 // pred_check_branch
      %63 = sbr.rel (0) target = $region13
    $region12: #{tpu_custom_call.1} parent=1 // pred_region
      %s65 = ssub.s32 16, 16
      %66 = vsyncadd [#allocation4], %s65
      %s68 = sshll.u32 [#allocation5], 4
      %s69 = int_to_ptr.vmem [resolvable:$true] %s68
      %71 = dma.vmem_to_hbm [thread:$0]  %s69, 16, %s1, [#allocation4]
    $region13: #{tpu_custom_call.1} parent=1 // pred_fallthru
      _
    // Predicated region
    $region14: #{tpu_custom_call.1} parent=1 // pred_check
      _
    $region15: #{tpu_custom_call.1} parent=1 // pred_check_branch
      %73 = sbr.rel (0) target = $region17
    $region16: #{tpu_custom_call.1} parent=1 // pred_region
      %74 = dma.done [#allocation4], 16
    $region17: #{tpu_custom_call.1} parent=1 // pred_fallthru
      _
    %75 = vsyncpa [#allocation3], 1
    %76 = vsyncpa [#allocation4], 1

</llo_original>
